<compile_context>
chip_gen: v7x
topology: tpu7x:2x2x1
jax: 0.10.0
libtpu: 0.0.40
codegen_flags: <defaults>
</compile_context>

<pallas_src>
import jax
import jax.numpy as jnp
from jax.experimental import pallas as pl
from jax.experimental.pallas import tpu as pltpu

# Original (logical) sizes -- match the PyTorch module.
FEATURE_NUM = 183
HIDDEN1 = 300
HIDDEN2 = 100
NUM_CLASSES = 7  # len(gestures)

# Lane-aligned (padded) sizes used inside the kernel.
F_PAD = 256    # 183 -> 256  (one full 256-wide MXU contraction on v6e/v7x)
H1_PAD = 384   # 300 -> 384
H2_PAD = 128   # 100 -> 128
C_PAD = 128    # 7   -> 128  (lane-dense output stores)

# Default batch-tile size (rows per grid step).
DEFAULT_TB = 512


def _round_up(n, m):
    return ((n + m - 1) // m) * m


def mlp_kernel(x_ref, w1_ref, b1_ref, w2_ref, b2_ref, w3_ref, b3_ref, o_ref):
    # linear1 + ReLU
    h1 = jnp.dot(x_ref[...], w1_ref[...], preferred_element_type=jnp.float32)
    h1 = jnp.maximum(h1 + b1_ref[...], 0.0)
    # linear2 + ReLU
    h2 = jnp.dot(h1, w2_ref[...], preferred_element_type=jnp.float32)
    h2 = jnp.maximum(h2 + b2_ref[...], 0.0)
    # linear3 (logits, no activation)
    out = jnp.dot(h2, w3_ref[...], preferred_element_type=jnp.float32)
    o_ref[...] = (out + b3_ref[...]).astype(o_ref.dtype)


def init_params(key):
    """Deterministic init matching nn.Linear default: U(-1/sqrt(fan_in), +1/sqrt(fan_in)).

    Returns the *logical* (unpadded) parameters, stored transposed as (in, out)
    so the kernel computes y = x @ W + b; biases are (1, out).
    """
    def linear(key, fan_in, fan_out):
        kw, kb = jax.random.split(key)
        bound = 1.0 / jnp.sqrt(fan_in)
        w = jax.random.uniform(kw, (fan_in, fan_out), jnp.float32, -bound, bound)
        b = jax.random.uniform(kb, (1, fan_out), jnp.float32, -bound, bound)
        return w, b

    k1, k2, k3 = jax.random.split(key, 3)
    w1, b1 = linear(k1, FEATURE_NUM, HIDDEN1)
    w2, b2 = linear(k2, HIDDEN1, HIDDEN2)
    w3, b3 = linear(k3, HIDDEN2, NUM_CLASSES)
    return w1, b1, w2, b2, w3, b3


def pad_params(params):
    """One-time host-side zero-padding of all weights/biases to lane-aligned shapes."""
    w1, b1, w2, b2, w3, b3 = params

    def pad2(a, rows, cols):
        return jnp.pad(a, ((0, rows - a.shape[0]), (0, cols - a.shape[1])))

    w1p = pad2(w1, F_PAD, H1_PAD)
    b1p = pad2(b1, 1, H1_PAD)
    w2p = pad2(w2, H1_PAD, H2_PAD)
    b2p = pad2(b2, 1, H2_PAD)
    w3p = pad2(w3, H2_PAD, C_PAD)
    b3p = pad2(b3, 1, C_PAD)
    return w1p, b1p, w2p, b2p, w3p, b3p


def mlp_forward(x, padded_params, tb=DEFAULT_TB):
    """x: (B, FEATURE_NUM) f32 -> logits (B, NUM_CLASSES) f32."""
    w1, b1, w2, b2, w3, b3 = padded_params
    B = x.shape[0]

    # Batch tile: at least 8 (sublane multiple), at most `tb`.
    TB = min(tb, _round_up(B, 8))
    B_pad = _round_up(B, TB)

    # Zero-pad x to (B_pad, F_PAD); padded feature columns hit zero weight rows,
    # padded batch rows produce garbage-free zeros we slice off afterwards.
    x_p = jnp.pad(x, ((0, B_pad - B), (0, F_PAD - x.shape[1])))

    grid = (B_pad // TB,)

    const = lambda shape: pl.BlockSpec(shape, lambda i: (0, 0))

    out_p = pl.pallas_call(
        mlp_kernel,
        out_shape=jax.ShapeDtypeStruct((B_pad, C_PAD), jnp.float32),
        grid=grid,
        in_specs=[
            pl.BlockSpec((TB, F_PAD), lambda i: (i, 0)),   # streaming x tile
            const(w1.shape), const(b1.shape),              # VMEM-resident weights
            const(w2.shape), const(b2.shape),
            const(w3.shape), const(b3.shape),
        ],
        out_specs=pl.BlockSpec((TB, C_PAD), lambda i: (i, 0)),
        compiler_params=pltpu.CompilerParams(
            dimension_semantics=("parallel",),             # megacore on v7x
        ),
    )(x_p, w1, b1, w2, b2, w3, b3)

    # Slice back to logical batch and the 7 real classes.
    return out_p[:B, :NUM_CLASSES]


def reference_forward(x, params):
    """Plain-JAX reference (unpadded) for correctness check."""
    w1, b1, w2, b2, w3, b3 = params
    h = jnp.maximum(x @ w1 + b1, 0.0)
    h = jnp.maximum(h @ w2 + b2, 0.0)
    return h @ w3 + b3


if __name__ == "__main__":
    key = jax.random.PRNGKey(0)
    k_params, k_x = jax.random.split(key)

    params = init_params(k_params)
    padded_params = pad_params(params)   # one-time host-side padding

    batch = 8
    x = jax.random.normal(k_x, (batch, FEATURE_NUM), dtype=jnp.float32)

    out = mlp_forward(x, padded_params)
    out = jax.block_until_ready(out)

    ref = reference_forward(x, params)
    assert out.shape == (batch, NUM_CLASSES)
    assert jnp.allclose(out, ref, atol=1e-4, rtol=1e-4)

    print("KERNEL_OK")
</pallas_src>

<mosaic_0001>
module attributes {stable_mosaic.version = 11 : i64} {
  func.func @mlp_kernel(%arg0: i32, %arg1: memref<8x256xf32, #tpu.memory_space<vmem>>, %arg2: memref<256x384xf32, #tpu.memory_space<vmem>>, %arg3: memref<1x384xf32, #tpu.memory_space<vmem>>, %arg4: memref<384x128xf32, #tpu.memory_space<vmem>>, %arg5: memref<1x128xf32, #tpu.memory_space<vmem>>, %arg6: memref<128x128xf32, #tpu.memory_space<vmem>>, %arg7: memref<1x128xf32, #tpu.memory_space<vmem>>, %arg8: memref<8x128xf32, #tpu.memory_space<vmem>>) attributes {dimension_semantics = [#tpu.dimension_semantics<parallel>], iteration_bounds = array<i64: 1>, scalar_prefetch = 0 : i64, scratch_operands = 0 : i64, tpu.core_type = #tpu.core_type<tc>, window_params = [{transform_indices = @transform_0, window_bounds = array<i64: 8, 256>}, {pipeline_mode = #tpu.pipeline_mode<synchronous>, transform_indices = @transform_1, window_bounds = array<i64: 256, 384>}, {pipeline_mode = #tpu.pipeline_mode<synchronous>, transform_indices = @transform_2, window_bounds = array<i64: 1, 384>}, {pipeline_mode = #tpu.pipeline_mode<synchronous>, transform_indices = @transform_3, window_bounds = array<i64: 384, 128>}, {pipeline_mode = #tpu.pipeline_mode<synchronous>, transform_indices = @transform_4, window_bounds = array<i64: 1, 128>}, {pipeline_mode = #tpu.pipeline_mode<synchronous>, transform_indices = @transform_5, window_bounds = array<i64: 128, 128>}, {pipeline_mode = #tpu.pipeline_mode<synchronous>, transform_indices = @transform_6, window_bounds = array<i64: 1, 128>}, {transform_indices = @transform_7, window_bounds = array<i64: 8, 128>}]} {
    %c0 = arith.constant 0 : index
    %c0_0 = arith.constant 0 : index
    %0 = vector.load %arg1[%c0, %c0_0] : memref<8x256xf32, #tpu.memory_space<vmem>>, vector<8x256xf32>
    %c0_1 = arith.constant 0 : index
    %c0_2 = arith.constant 0 : index
    %1 = vector.load %arg2[%c0_1, %c0_2] : memref<256x384xf32, #tpu.memory_space<vmem>>, vector<256x384xf32>
    %cst = arith.constant dense<0.000000e+00> : vector<8x384xf32>
    %2 = tpu.matmul %0, %1, %cst {dimension_numbers = #tpu.dot_dimension_numbers<[1], [0], [0], [1], [0, 0, 1, 1], [], []>} : vector<8x256xf32>, vector<256x384xf32>, vector<8x384xf32> -> vector<8x384xf32>
    %c0_3 = arith.constant 0 : index
    %c0_4 = arith.constant 0 : index
    %3 = vector.load %arg3[%c0_3, %c0_4] : memref<1x384xf32, #tpu.memory_space<vmem>>, vector<1x384xf32>
    %4 = vector.broadcast %3 : vector<1x384xf32> to vector<8x384xf32>
    %5 = arith.addf %2, %4 : vector<8x384xf32>
    %cst_5 = arith.constant 0.000000e+00 : f32
    %6 = vector.broadcast %cst_5 : f32 to vector<8x384xf32>
    %7 = arith.maximumf %5, %6 : vector<8x384xf32>
    %c0_6 = arith.constant 0 : index
    %c0_7 = arith.constant 0 : index
    %8 = vector.load %arg4[%c0_6, %c0_7] : memref<384x128xf32, #tpu.memory_space<vmem>>, vector<384x128xf32>
    %cst_8 = arith.constant dense<0.000000e+00> : vector<8x128xf32>
    %9 = tpu.matmul %7, %8, %cst_8 {dimension_numbers = #tpu.dot_dimension_numbers<[1], [0], [0], [1], [0, 0, 1, 1], [], []>} : vector<8x384xf32>, vector<384x128xf32>, vector<8x128xf32> -> vector<8x128xf32>
    %c0_9 = arith.constant 0 : index
    %c0_10 = arith.constant 0 : index
    %10 = vector.load %arg5[%c0_9, %c0_10] : memref<1x128xf32, #tpu.memory_space<vmem>>, vector<1x128xf32>
    %11 = vector.broadcast %10 : vector<1x128xf32> to vector<8x128xf32>
    %12 = arith.addf %9, %11 : vector<8x128xf32>
    %cst_11 = arith.constant 0.000000e+00 : f32
    %13 = vector.broadcast %cst_11 : f32 to vector<8x128xf32>
    %14 = arith.maximumf %12, %13 : vector<8x128xf32>
    %c0_12 = arith.constant 0 : index
    %c0_13 = arith.constant 0 : index
    %15 = vector.load %arg6[%c0_12, %c0_13] : memref<128x128xf32, #tpu.memory_space<vmem>>, vector<128x128xf32>
    %cst_14 = arith.constant dense<0.000000e+00> : vector<8x128xf32>
    %16 = tpu.matmul %14, %15, %cst_14 {dimension_numbers = #tpu.dot_dimension_numbers<[1], [0], [0], [1], [0, 0, 1, 1], [], []>} : vector<8x128xf32>, vector<128x128xf32>, vector<8x128xf32> -> vector<8x128xf32>
    %c0_15 = arith.constant 0 : index
    %c0_16 = arith.constant 0 : index
    %17 = vector.load %arg7[%c0_15, %c0_16] : memref<1x128xf32, #tpu.memory_space<vmem>>, vector<1x128xf32>
    %18 = vector.broadcast %17 : vector<1x128xf32> to vector<8x128xf32>
    %19 = arith.addf %16, %18 : vector<8x128xf32>
    %c0_17 = arith.constant 0 : index
    %c0_18 = arith.constant 0 : index
    %20 = vector.load %arg8[%c0_17, %c0_18] : memref<8x128xf32, #tpu.memory_space<vmem>>, vector<8x128xf32>
    tpu.vector_store %arg8[%c0_17, %c0_18], %19 {strides = array<i32>} : memref<8x128xf32, #tpu.memory_space<vmem>>, vector<8x128xf32>,
    return
  }
  func.func @transform_0(%arg0: i32) -> (i32, i32) {
    %c0_i32 = arith.constant 0 : i32
    %c0_i32_0 = arith.constant 0 : i32
    return %arg0, %c0_i32 : i32, i32
  }
  func.func @transform_1(%arg0: i32) -> (i32, i32) {
    %c0_i32 = arith.constant 0 : i32
    %c0_i32_0 = arith.constant 0 : i32
    %c0_i32_1 = arith.constant 0 : i32
    return %c0_i32, %c0_i32_0 : i32, i32
  }
  func.func @transform_2(%arg0: i32) -> (i32, i32) {
    %c0_i32 = arith.constant 0 : i32
    %c0_i32_0 = arith.constant 0 : i32
    %c0_i32_1 = arith.constant 0 : i32
    return %c0_i32, %c0_i32_0 : i32, i32
  }
  func.func @transform_3(%arg0: i32) -> (i32, i32) {
    %c0_i32 = arith.constant 0 : i32
    %c0_i32_0 = arith.constant 0 : i32
    %c0_i32_1 = arith.constant 0 : i32
    return %c0_i32, %c0_i32_0 : i32, i32
  }
  func.func @transform_4(%arg0: i32) -> (i32, i32) {
    %c0_i32 = arith.constant 0 : i32
    %c0_i32_0 = arith.constant 0 : i32
    %c0_i32_1 = arith.constant 0 : i32
    return %c0_i32, %c0_i32_0 : i32, i32
  }
  func.func @transform_5(%arg0: i32) -> (i32, i32) {
    %c0_i32 = arith.constant 0 : i32
    %c0_i32_0 = arith.constant 0 : i32
    %c0_i32_1 = arith.constant 0 : i32
    return %c0_i32, %c0_i32_0 : i32, i32
  }
  func.func @transform_6(%arg0: i32) -> (i32, i32) {
    %c0_i32 = arith.constant 0 : i32
    %c0_i32_0 = arith.constant 0 : i32
    %c0_i32_1 = arith.constant 0 : i32
    return %c0_i32, %c0_i32_0 : i32, i32
  }
  func.func @transform_7(%arg0: i32) -> (i32, i32) {
    %c0_i32 = arith.constant 0 : i32
    %c0_i32_0 = arith.constant 0 : i32
    return %arg0, %c0_i32 : i32, i32
  }
}

</mosaic_0001>

<llo_original>
// kernel: tpu_custom_call.1
$region0: #{tpu_custom_call.1}
  #allocation0 [shape = 'u32[]', space=smem, size = 0x4, offset = 0x4, fixed_abs, tag = 'smem constant byte address 0x4 - core index']
  #allocation1 [shape = 'u32[144,128]{1,0:T(1,128)}', space=vmem, size = 0x12000, scoped, tag = 'internal scratch']
  %s0 = inlined_call_operand.hbm [shape: f32[8,256], index: 0, kind: input, shape index: {}]
  %s1 = inlined_call_operand.hbm [shape: f32[256,384], index: 1, kind: input, shape index: {}]
  %s2 = inlined_call_operand.vmem [shape: f32[1,384], index: 2, kind: input, shape index: {}]
  %s3 = inlined_call_operand.hbm [shape: f32[384,128], index: 3, kind: input, shape index: {}]
  %s4 = inlined_call_operand.vmem [shape: f32[1,128], index: 4, kind: input, shape index: {}]
  %s5 = inlined_call_operand.hbm [shape: f32[128,128], index: 5, kind: input, shape index: {}]
  %s6 = inlined_call_operand.vmem [shape: f32[1,128], index: 6, kind: input, shape index: {}]
  %s7 = inlined_call_operand.hbm [shape: f32[8,128], index: 7, kind: output, shape index: {}]
  %s8 = sld [smem:[#allocation0]]
  $region54: #{tpu_custom_call.1} parent=0
    _
  %s10 = ssub.s32 1, %s8
  %s11 = scalar_select 0, %s10, %s8
  $region1: #{tpu_custom_call.1} parent=0
    #allocation2 [shape = 'u8[8192]{0}', space=vmem, size = 0x2000, scoped, tag = 'input window, operand 0, single buffered']
    #allocation3 [shape = 's32[1]{0}', space=sflag, size = 0x4, scoped, tag = 'scoped memory for tpu_custom_call.1']
    #allocation4 [shape = 's32[1]{0}', space=sflag, size = 0x4, scoped, tag = 'scoped memory for tpu_custom_call.1']
    #allocation5 [shape = 'u8[393216]{0}', space=vmem, size = 0x60000, scoped, tag = 'input window, operand 1, single buffered']
    #allocation6 [shape = 's32[1]{0}', space=sflag, size = 0x4, scoped, tag = 'scoped memory for tpu_custom_call.1']
    #allocation7 [shape = 'u8[196608]{0}', space=vmem, size = 0x30000, scoped, tag = 'input window, operand 3, single buffered']
    #allocation8 [shape = 'u8[65536]{0}', space=vmem, size = 0x10000, scoped, tag = 'input window, operand 5, single buffered']
    #allocation9 [shape = 's32[1]{0}', space=sflag, size = 0x4, scoped, tag = 'scoped memory for tpu_custom_call.1']
    #allocation10 [shape = 'u8[4096]{0}', space=vmem, size = 0x1000, scoped, tag = 'output window, operand 0, single buffered']
    %12 = vsyncpa [#allocation3], 0
    %13 = vsyncpa [#allocation6], 0
    %14 = vsyncpa [#allocation9], 0
    %15 = vsyncpa [#allocation4], 0
    // Predicated region
    $region2: #{tpu_custom_call.1} parent=1 // pred_check
      _
    $region3: #{tpu_custom_call.1} parent=1 // pred_check_branch
      %17 = sbr.rel (0) target = $region5
    $region4: #{tpu_custom_call.1} parent=1 // pred_region
      %s19 = ssub.s32 256, 256
      %20 = vsyncadd [#allocation3], %s19
      %s22 = sshll.u32 [#allocation2], 4
      %s23 = int_to_ptr.vmem [resolvable:$true] %s22
      %25 = dma.hbm_to_vmem [thread:$0]  %s0, 256, %s23, [#allocation3]
    $region5: #{tpu_custom_call.1} parent=1 // pred_fallthru
      _
    // Predicated region
    $region6: #{tpu_custom_call.1} parent=1 // pred_check
      _
    $region7: #{tpu_custom_call.1} parent=1 // pred_check_branch
      %27 = sbr.rel (0) target = $region9
    $region8: #{tpu_custom_call.1} parent=1 // pred_region
      %s29 = ssub.s32 12288, 12288
      %30 = vsyncadd [#allocation6], %s29
      %s31 = sshll.u32 [#allocation5], 4
      %s32 = int_to_ptr.vmem [resolvable:$true] %s31
      %37 = dma.hbm_to_vmem [thread:$0]  %s1, 12288, %s32, [#allocation6], 384, 384, 24
    $region9: #{tpu_custom_call.1} parent=1 // pred_fallthru
      _
    // Predicated region
    $region10: #{tpu_custom_call.1} parent=1 // pred_check
      _
    $region11: #{tpu_custom_call.1} parent=1 // pred_check_branch
      %39 = sbr.rel (0) target = $region13
    $region12: #{tpu_custom_call.1} parent=1 // pred_region
      _
    $region13: #{tpu_custom_call.1} parent=1 // pred_fallthru
      _
    // Predicated region
    $region14: #{tpu_custom_call.1} parent=1 // pred_check
      _
    $region15: #{tpu_custom_call.1} parent=1 // pred_check_branch
      %41 = sbr.rel (0) target = $region17
    $region16: #{tpu_custom_call.1} parent=1 // pred_region
      %s43 = ssub.s32 6144, 6144
      %44 = vsyncadd [#allocation6], %s43
      %s45 = sshll.u32 [#allocation7], 4
      %s46 = int_to_ptr.vmem [resolvable:$true] %s45
      %51 = dma.hbm_to_vmem [thread:$0]  %s3, 6144, %s46, [#allocation6], 128, 128, 8
    $region17: #{tpu_custom_call.1} parent=1 // pred_fallthru
      _
    // Predicated region
    $region18: #{tpu_custom_call.1} parent=1 // pred_check
      _
    $region19: #{tpu_custom_call.1} parent=1 // pred_check_branch
      %53 = sbr.rel (0) target = $region21
    $region20: #{tpu_custom_call.1} parent=1 // pred_region
      _
    $region21: #{tpu_custom_call.1} parent=1 // pred_fallthru
      _
    // Predicated region
    $region22: #{tpu_custom_call.1} parent=1 // pred_check
      _
    $region23: #{tpu_custom_call.1} parent=1 // pred_check_branch
      %55 = sbr.rel (0) target = $region25
    $region24: #{tpu_custom_call.1} parent=1 // pred_region
      %s57 = ssub.s32 2048, 2048
      %58 = vsyncadd [#allocation9], %s57
      %s59 = sshll.u32 [#allocation8], 4
      %s60 = int_to_ptr.vmem [resolvable:$true] %s59
      %65 = dma.hbm_to_vmem [thread:$0]  %s5, 2048, %s60, [#allocation9], 128, 128, 8
    $region25: #{tpu_custom_call.1} parent=1 // pred_fallthru
      _
    // Predicated region
    $region26: #{tpu_custom_call.1} parent=1 // pred_check
      _
    $region27: #{tpu_custom_call.1} parent=1 // pred_check_branch
      %67 = sbr.rel (0) target = $region29
    $region28: #{tpu_custom_call.1} parent=1 // pred_region
      _
    $region29: #{tpu_custom_call.1} parent=1 // pred_fallthru
      _
    // Predicated region
    $region30: #{tpu_custom_call.1} parent=1 // pred_check
      _
    $region31: #{tpu_custom_call.1} parent=1 // pred_check_branch
      %69 = sbr.rel (0) target = $region33
    $region32: #{tpu_custom_call.1} parent=1 // pred_region
      %70 = dma.done [#allocation3], 256
    $region33: #{tpu_custom_call.1} parent=1 // pred_fallthru
      _
    // Predicated region
    $region34: #{tpu_custom_call.1} parent=1 // pred_check
      _
    $region35: #{tpu_custom_call.1} parent=1 // pred_check_branch
      %72 = sbr.rel (0) target = $region37
    $region36: #{tpu_custom_call.1} parent=1 // pred_region
      %73 = dma.done [#allocation6], 12288
    $region37: #{tpu_custom_call.1} parent=1 // pred_fallthru
      _
    // Predicated region
    $region38: #{tpu_custom_call.1} parent=1 // pred_check
      _
    $region39: #{tpu_custom_call.1} parent=1 // pred_check_branch
      %75 = sbr.rel (0) target = $region41
    $region40: #{tpu_custom_call.1} parent=1 // pred_region
      %76 = dma.done [#allocation6], 6144
    $region41: #{tpu_custom_call.1} parent=1 // pred_fallthru
      _
    // Predicated region
    $region42: #{tpu_custom_call.1} parent=1 // pred_check
      _
    $region43: #{tpu_custom_call.1} parent=1 // pred_check_branch
      %78 = sbr.rel (0) target = $region45
    $region44: #{tpu_custom_call.1} parent=1 // pred_region
      %79 = dma.done [#allocation9], 2048
    $region45: #{tpu_custom_call.1} parent=1 // pred_fallthru
      _
    %v80 = vld [vmem:[#allocation2] sm:$0xff]
    %v81 = vld [vmem:[#allocation2 + $0x8] sm:$0xff]
    %v82 = vld [vmem:[#allocation5] sm:$0xff]
    %v83 = vld [vmem:[#allocation5 + $0x8] sm:$0xff]
    %v84 = vld [vmem:[#allocation5 + $0x10] sm:$0xff]
    %v85 = vld [vmem:[#allocation5 + $0x18] sm:$0xff]
    %v86 = vld [vmem:[#allocation5 + $0x20] sm:$0xff]
    %v87 = vld [vmem:[#allocation5 + $0x28] sm:$0xff]
    %v88 = vld [vmem:[#allocation5 + $0x30] sm:$0xff]
    %v89 = vld [vmem:[#allocation5 + $0x38] sm:$0xff]
    %v90 = vld [vmem:[#allocation5 + $0x40] sm:$0xff]
    %v91 = vld [vmem:[#allocation5 + $0x48] sm:$0xff]
    %v92 = vld [vmem:[#allocation5 + $0x50] sm:$0xff]
    %v93 = vld [vmem:[#allocation5 + $0x58] sm:$0xff]
    %v94 = vld [vmem:[#allocation5 + $0x60] sm:$0xff]
    %v95 = vld [vmem:[#allocation5 + $0x68] sm:$0xff]
    %v96 = vld [vmem:[#allocation5 + $0x70] sm:$0xff]
    %v97 = vld [vmem:[#allocation5 + $0x78] sm:$0xff]
    %v98 = vld [vmem:[#allocation5 + $0x80] sm:$0xff]
    %v99 = vld [vmem:[#allocation5 + $0x88] sm:$0xff]
    %v100 = vld [vmem:[#allocation5 + $0x90] sm:$0xff]
    %v101 = vld [vmem:[#allocation5 + $0x98] sm:$0xff]
    %v102 = vld [vmem:[#allocation5 + $0xa0] sm:$0xff]
    %v103 = vld [vmem:[#allocation5 + $0xa8] sm:$0xff]
    %v104 = vld [vmem:[#allocation5 + $0xb0] sm:$0xff]
    %v105 = vld [vmem:[#allocation5 + $0xb8] sm:$0xff]
    %v106 = vld [vmem:[#allocation5 + $0xc0] sm:$0xff]
    %v107 = vld [vmem:[#allocation5 + $0xc8] sm:$0xff]
    %v108 = vld [vmem:[#allocation5 + $0xd0] sm:$0xff]
    %v109 = vld [vmem:[#allocation5 + $0xd8] sm:$0xff]
    %v110 = vld [vmem:[#allocation5 + $0xe0] sm:$0xff]
    %v111 = vld [vmem:[#allocation5 + $0xe8] sm:$0xff]
    %v112 = vld [vmem:[#allocation5 + $0xf0] sm:$0xff]
    %v113 = vld [vmem:[#allocation5 + $0xf8] sm:$0xff]
    %v114 = vld [vmem:[#allocation5 + $0x100] sm:$0xff]
    %v115 = vld [vmem:[#allocation5 + $0x108] sm:$0xff]
    %v116 = vld [vmem:[#allocation5 + $0x110] sm:$0xff]
    %v117 = vld [vmem:[#allocation5 + $0x118] sm:$0xff]
    %v118 = vld [vmem:[#allocation5 + $0x120] sm:$0xff]
    %v119 = vld [vmem:[#allocation5 + $0x128] sm:$0xff]
    %v120 = vld [vmem:[#allocation5 + $0x130] sm:$0xff]
    %v121 = vld [vmem:[#allocation5 + $0x138] sm:$0xff]
    %v122 = vld [vmem:[#allocation5 + $0x140] sm:$0xff]
    %v123 = vld [vmem:[#allocation5 + $0x148] sm:$0xff]
    %v124 = vld [vmem:[#allocation5 + $0x150] sm:$0xff]
    %v125 = vld [vmem:[#allocation5 + $0x158] sm:$0xff]
    %v126 = vld [vmem:[#allocation5 + $0x160] sm:$0xff]
    %v127 = vld [vmem:[#allocation5 + $0x168] sm:$0xff]
    %v128 = vld [vmem:[#allocation5 + $0x170] sm:$0xff]
    %v129 = vld [vmem:[#allocation5 + $0x178] sm:$0xff]
    %v130 = vld [vmem:[#allocation5 + $0x180] sm:$0xff]
    %v131 = vld [vmem:[#allocation5 + $0x188] sm:$0xff]
    %v132 = vld [vmem:[#allocation5 + $0x190] sm:$0xff]
    %v133 = vld [vmem:[#allocation5 + $0x198] sm:$0xff]
    %v134 = vld [vmem:[#allocation5 + $0x1a0] sm:$0xff]
    %v135 = vld [vmem:[#allocation5 + $0x1a8] sm:$0xff]
    %v136 = vld [vmem:[#allocation5 + $0x1b0] sm:$0xff]
    %v137 = vld [vmem:[#allocation5 + $0x1b8] sm:$0xff]
    %v138 = vld [vmem:[#allocation5 + $0x1c0] sm:$0xff]
    %v139 = vld [vmem:[#allocation5 + $0x1c8] sm:$0xff]
    %v140 = vld [vmem:[#allocation5 + $0x1d0] sm:$0xff]
    %v141 = vld [vmem:[#allocation5 + $0x1d8] sm:$0xff]
    %v142 = vld [vmem:[#allocation5 + $0x1e0] sm:$0xff]
    %v143 = vld [vmem:[#allocation5 + $0x1e8] sm:$0xff]
    %v144 = vld [vmem:[#allocation5 + $0x1f0] sm:$0xff]
    %v145 = vld [vmem:[#allocation5 + $0x1f8] sm:$0xff]
    %v146 = vld [vmem:[#allocation5 + $0x200] sm:$0xff]
    %v147 = vld [vmem:[#allocation5 + $0x208] sm:$0xff]
    %v148 = vld [vmem:[#allocation5 + $0x210] sm:$0xff]
    %v149 = vld [vmem:[#allocation5 + $0x218] sm:$0xff]
    %v150 = vld [vmem:[#allocation5 + $0x220] sm:$0xff]
    %v151 = vld [vmem:[#allocation5 + $0x228] sm:$0xff]
    %v152 = vld [vmem:[#allocation5 + $0x230] sm:$0xff]
    %v153 = vld [vmem:[#allocation5 + $0x238] sm:$0xff]
    %v154 = vld [vmem:[#allocation5 + $0x240] sm:$0xff]
    %v155 = vld [vmem:[#allocation5 + $0x248] sm:$0xff]
    %v156 = vld [vmem:[#allocation5 + $0x250] sm:$0xff]
    %v157 = vld [vmem:[#allocation5 + $0x258] sm:$0xff]
    %v158 = vld [vmem:[#allocation5 + $0x260] sm:$0xff]
    %v159 = vld [vmem:[#allocation5 + $0x268] sm:$0xff]
    %v160 = vld [vmem:[#allocation5 + $0x270] sm:$0xff]
    %v161 = vld [vmem:[#allocation5 + $0x278] sm:$0xff]
    %v162 = vld [vmem:[#allocation5 + $0x280] sm:$0xff]
    %v163 = vld [vmem:[#allocation5 + $0x288] sm:$0xff]
    %v164 = vld [vmem:[#allocation5 + $0x290] sm:$0xff]
    %v165 = vld [vmem:[#allocation5 + $0x298] sm:$0xff]
    %v166 = vld [vmem:[#allocation5 + $0x2a0] sm:$0xff]
    %v167 = vld [vmem:[#allocation5 + $0x2a8] sm:$0xff]
    %v168 = vld [vmem:[#allocation5 + $0x2b0] sm:$0xff]
    %v169 = vld [vmem:[#allocation5 + $0x2b8] sm:$0xff]
    %v170 = vld [vmem:[#allocation5 + $0x2c0] sm:$0xff]
    %v171 = vld [vmem:[#allocation5 + $0x2c8] sm:$0xff]
    %v172 = vld [vmem:[#allocation5 + $0x2d0] sm:$0xff]
    %v173 = vld [vmem:[#allocation5 + $0x2d8] sm:$0xff]
    %v174 = vld [vmem:[#allocation5 + $0x2e0] sm:$0xff]
    %v175 = vld [vmem:[#allocation5 + $0x2e8] sm:$0xff]
    %v176 = vld [vmem:[#allocation5 + $0x2f0] sm:$0xff]
    %v177 = vld [vmem:[#allocation5 + $0x2f8] sm:$0xff]
    %v178 = vld [vmem:[%s2] sm:$0x7]
    %v180 = vlaneseq
    %v181 = vshrl.u32 %v180, 7
    %v182 = vsub.s32 0, %v181
    %v183 = vrot.slane %v178, %v182
    %v184 = vlaneseq
    %v185 = vshrl.u32 %v184, 7
    %v186 = vsub.s32 1, %v185
    %v187 = vrot.slane %v178, %v186
    %v188 = vlaneseq
    %v189 = vshrl.u32 %v188, 7
    %v190 = vsub.s32 2, %v189
    %v191 = vrot.slane %v178, %v190
    %195 = vmatprep.subr.mxu0 %v83
    %196 = vmatpush1.msra.mxu0 %v82
    %197 = vmatprep.subr.mxu0 %v86
    %198 = vmatpush1.msra.mxu0 %v85
    %199 = vmatprep.subr.mxu0 %v89
    %200 = vmatpush1.msra.mxu0 %v88
    %201 = vmatprep.subr.mxu0 %v92
    %202 = vmatpush1.msra.mxu0 %v91
    %203 = vmatprep.subr.mxu0 %v95
    %204 = vmatpush1.msra.mxu0 %v94
    %205 = vmatprep.subr.mxu0 %v98
    %206 = vmatpush1.msra.mxu0 %v97
    %207 = vmatprep.subr.mxu0 %v101
    %208 = vmatpush1.msra.mxu0 %v100
    %209 = vmatprep.subr.mxu0 %v104
    %210 = vmatpush1.msra.mxu0 %v103
    %211 = vmatprep.subr.mxu0 %v107
    %212 = vmatpush1.msra.mxu0 %v106
    %213 = vmatprep.subr.mxu0 %v110
    %214 = vmatpush1.msra.mxu0 %v109
    %215 = vmatprep.subr.mxu0 %v113
    %216 = vmatpush1.msra.mxu0 %v112
    %217 = vmatprep.subr.mxu0 %v116
    %218 = vmatpush1.msra.mxu0 %v115
    %219 = vmatprep.subr.mxu0 %v119
    %220 = vmatpush1.msra.mxu0 %v118
    %221 = vmatprep.subr.mxu0 %v122
    %222 = vmatpush1.msra.mxu0 %v121
    %223 = vmatprep.subr.mxu0 %v125
    %224 = vmatpush1.msra.mxu0 %v124
    %225 = vmatprep.subr.mxu0 %v128
    %226 = vmatpush1.msra.mxu0 %v127
    %227 = vmatprep.subr.mxu0 %v131
    %228 = vmatpush1.msra.mxu0 %v130
    %229 = vmatprep.subr.mxu0 %v134
    %230 = vmatpush1.msra.mxu0 %v133
    %231 = vmatprep.subr.mxu0 %v137
    %232 = vmatpush1.msra.mxu0 %v136
    %233 = vmatprep.subr.mxu0 %v140
    %234 = vmatpush1.msra.mxu0 %v139
    %235 = vmatprep.subr.mxu0 %v143
    %236 = vmatpush1.msra.mxu0 %v142
    %237 = vmatprep.subr.mxu0 %v146
    %238 = vmatpush1.msra.mxu0 %v145
    %239 = vmatprep.subr.mxu0 %v149
    %240 = vmatpush1.msra.mxu0 %v148
    %241 = vmatprep.subr.mxu0 %v152
    %242 = vmatpush1.msra.mxu0 %v151
    %243 = vmatprep.subr.mxu0 %v155
    %244 = vmatpush1.msra.mxu0 %v154
    %245 = vmatprep.subr.mxu0 %v158
    %246 = vmatpush1.msra.mxu0 %v157
    %247 = vmatprep.subr.mxu0 %v161
    %248 = vmatpush1.msra.mxu0 %v160
    %249 = vmatprep.subr.mxu0 %v164
    %250 = vmatpush1.msra.mxu0 %v163
    %251 = vmatprep.subr.mxu0 %v167
    %252 = vmatpush1.msra.mxu0 %v166
    %253 = vmatprep.subr.mxu0 %v170
    %254 = vmatpush1.msra.mxu0 %v169
    %255 = vmatprep.subr.mxu0 %v173
    %256 = vmatpush1.msra.mxu0 %v172
    %257 = vmatprep.subr.mxu0 %v176
    %258 = vmatpush1.msra.mxu0 %v175
    %259 = vmatprep.mubr.f32.mxu0 %v81
    %260 = vmatmul.mubr.f32.gmra.mrb[0].mxu0 %v80
    %v261 = vpop.f32.mrb[0].mxu0
    %v262 = vadd.f32 %v183, %v261
    %v263 = vpop.f32.mrb[0].mxu0
    %v264 = vadd.f32 %v187, %v263
    %265 = vdwg.mxu0
    %266 = vmatprep.subr.mxu0 0.0
    %267 = vmatpush1.msra.mxu0 %v84
    %268 = vmatprep.subr.mxu0 0.0
    %269 = vmatpush1.msra.mxu0 %v87
    %270 = vmatprep.subr.mxu0 0.0
    %271 = vmatpush1.msra.mxu0 %v90
    %272 = vmatprep.subr.mxu0 0.0
    %273 = vmatpush1.msra.mxu0 %v93
    %274 = vmatprep.subr.mxu0 0.0
    %275 = vmatpush1.msra.mxu0 %v96
    %276 = vmatprep.subr.mxu0 0.0
    %277 = vmatpush1.msra.mxu0 %v99
    %278 = vmatprep.subr.mxu0 0.0
    %279 = vmatpush1.msra.mxu0 %v102
    %280 = vmatprep.subr.mxu0 0.0
    %281 = vmatpush1.msra.mxu0 %v105
    %282 = vmatprep.subr.mxu0 0.0
    %283 = vmatpush1.msra.mxu0 %v108
    %284 = vmatprep.subr.mxu0 0.0
    %285 = vmatpush1.msra.mxu0 %v111
    %286 = vmatprep.subr.mxu0 0.0
    %287 = vmatpush1.msra.mxu0 %v114
    %288 = vmatprep.subr.mxu0 0.0
    %289 = vmatpush1.msra.mxu0 %v117
    %290 = vmatprep.subr.mxu0 0.0
    %291 = vmatpush1.msra.mxu0 %v120
    %292 = vmatprep.subr.mxu0 0.0
    %293 = vmatpush1.msra.mxu0 %v123
    %294 = vmatprep.subr.mxu0 0.0
    %295 = vmatpush1.msra.mxu0 %v126
    %296 = vmatprep.subr.mxu0 0.0
    %297 = vmatpush1.msra.mxu0 %v129
    %298 = vmatprep.subr.mxu0 0.0
    %299 = vmatpush1.msra.mxu0 %v132
    %300 = vmatprep.subr.mxu0 0.0
    %301 = vmatpush1.msra.mxu0 %v135
    %302 = vmatprep.subr.mxu0 0.0
    %303 = vmatpush1.msra.mxu0 %v138
    %304 = vmatprep.subr.mxu0 0.0
    %305 = vmatpush1.msra.mxu0 %v141
    %306 = vmatprep.subr.mxu0 0.0
    %307 = vmatpush1.msra.mxu0 %v144
    %308 = vmatprep.subr.mxu0 0.0
    %309 = vmatpush1.msra.mxu0 %v147
    %310 = vmatprep.subr.mxu0 0.0
    %311 = vmatpush1.msra.mxu0 %v150
    %312 = vmatprep.subr.mxu0 0.0
    %313 = vmatpush1.msra.mxu0 %v153
    %314 = vmatprep.subr.mxu0 0.0
    %315 = vmatpush1.msra.mxu0 %v156
    %316 = vmatprep.subr.mxu0 0.0
    %317 = vmatpush1.msra.mxu0 %v159
    %318 = vmatprep.subr.mxu0 0.0
    %319 = vmatpush1.msra.mxu0 %v162
    %320 = vmatprep.subr.mxu0 0.0
    %321 = vmatpush1.msra.mxu0 %v165
    %322 = vmatprep.subr.mxu0 0.0
    %323 = vmatpush1.msra.mxu0 %v168
    %324 = vmatprep.subr.mxu0 0.0
    %325 = vmatpush1.msra.mxu0 %v171
    %326 = vmatprep.subr.mxu0 0.0
    %327 = vmatpush1.msra.mxu0 %v174
    %328 = vmatprep.subr.mxu0 0.0
    %329 = vmatpush1.msra.mxu0 %v177
    %330 = vmatprep.mubr.f32.mxu0 %v81
    %331 = vmatmul.mubr.f32.gmra.mrb[0].mxu0 %v80
    %v332 = vpop.f32.mrb[0].mxu0
    %v333 = vadd.f32 %v191, %v332
    %v334 = vpop.f32.mrb[0].mxu0
    %335 = vdwg.mxu0
    %v336 = vmax.f32 %v262, 0.0
    %v337 = vmax.f32 %v264, 0.0
    %v338 = vmax.f32 %v333, 0.0
    %v339 = vld [vmem:[#allocation7] sm:$0xff]
    %v340 = vld [vmem:[#allocation7 + $0x8] sm:$0xff]
    %v341 = vld [vmem:[#allocation7 + $0x10] sm:$0xff]
    %v342 = vld [vmem:[#allocation7 + $0x18] sm:$0xff]
    %v343 = vld [vmem:[#allocation7 + $0x20] sm:$0xff]
    %v344 = vld [vmem:[#allocation7 + $0x28] sm:$0xff]
    %v345 = vld [vmem:[#allocation7 + $0x30] sm:$0xff]
    %v346 = vld [vmem:[#allocation7 + $0x38] sm:$0xff]
    %v347 = vld [vmem:[#allocation7 + $0x40] sm:$0xff]
    %v348 = vld [vmem:[#allocation7 + $0x48] sm:$0xff]
    %v349 = vld [vmem:[#allocation7 + $0x50] sm:$0xff]
    %v350 = vld [vmem:[#allocation7 + $0x58] sm:$0xff]
    %v351 = vld [vmem:[#allocation7 + $0x60] sm:$0xff]
    %v352 = vld [vmem:[#allocation7 + $0x68] sm:$0xff]
    %v353 = vld [vmem:[#allocation7 + $0x70] sm:$0xff]
    %v354 = vld [vmem:[#allocation7 + $0x78] sm:$0xff]
    %v355 = vld [vmem:[#allocation7 + $0x80] sm:$0xff]
    %v356 = vld [vmem:[#allocation7 + $0x88] sm:$0xff]
    %v357 = vld [vmem:[#allocation7 + $0x90] sm:$0xff]
    %v358 = vld [vmem:[#allocation7 + $0x98] sm:$0xff]
    %v359 = vld [vmem:[#allocation7 + $0xa0] sm:$0xff]
    %v360 = vld [vmem:[#allocation7 + $0xa8] sm:$0xff]
    %v361 = vld [vmem:[#allocation7 + $0xb0] sm:$0xff]
    %v362 = vld [vmem:[#allocation7 + $0xb8] sm:$0xff]
    %v363 = vld [vmem:[#allocation7 + $0xc0] sm:$0xff]
    %v364 = vld [vmem:[#allocation7 + $0xc8] sm:$0xff]
    %v365 = vld [vmem:[#allocation7 + $0xd0] sm:$0xff]
    %v366 = vld [vmem:[#allocation7 + $0xd8] sm:$0xff]
    %v367 = vld [vmem:[#allocation7 + $0xe0] sm:$0xff]
    %v368 = vld [vmem:[#allocation7 + $0xe8] sm:$0xff]
    %v369 = vld [vmem:[#allocation7 + $0xf0] sm:$0xff]
    %v370 = vld [vmem:[#allocation7 + $0xf8] sm:$0xff]
    %v371 = vld [vmem:[#allocation7 + $0x100] sm:$0xff]
    %v372 = vld [vmem:[#allocation7 + $0x108] sm:$0xff]
    %v373 = vld [vmem:[#allocation7 + $0x110] sm:$0xff]
    %v374 = vld [vmem:[#allocation7 + $0x118] sm:$0xff]
    %v375 = vld [vmem:[#allocation7 + $0x120] sm:$0xff]
    %v376 = vld [vmem:[#allocation7 + $0x128] sm:$0xff]
    %v377 = vld [vmem:[#allocation7 + $0x130] sm:$0xff]
    %v378 = vld [vmem:[#allocation7 + $0x138] sm:$0xff]
    %v379 = vld [vmem:[#allocation7 + $0x140] sm:$0xff]
    %v380 = vld [vmem:[#allocation7 + $0x148] sm:$0xff]
    %v381 = vld [vmem:[#allocation7 + $0x150] sm:$0xff]
    %v382 = vld [vmem:[#allocation7 + $0x158] sm:$0xff]
    %v383 = vld [vmem:[#allocation7 + $0x160] sm:$0xff]
    %v384 = vld [vmem:[#allocation7 + $0x168] sm:$0xff]
    %v385 = vld [vmem:[#allocation7 + $0x170] sm:$0xff]
    %v386 = vld [vmem:[#allocation7 + $0x178] sm:$0xff]
    %v387 = vld [vmem:[%s4] sm:$0x1]
    %v389 = vlaneseq
    %v390 = vshrl.u32 %v389, 7
    %v391 = vsub.s32 0, %v390
    %v392 = vrot.slane %v387, %v391
    %394 = vmatprep.subr.mxu0 0.0
    %395 = vmatpush1.msra.mxu0 %v339
    %396 = vmatprep.subr.mxu0 0.0
    %397 = vmatpush1.msra.mxu0 %v340
    %398 = vmatprep.subr.mxu0 0.0
    %399 = vmatpush1.msra.mxu0 %v341
    %400 = vmatprep.subr.mxu0 0.0
    %401 = vmatpush1.msra.mxu0 %v342
    %402 = vmatprep.subr.mxu0 0.0
    %403 = vmatpush1.msra.mxu0 %v343
    %404 = vmatprep.subr.mxu0 0.0
    %405 = vmatpush1.msra.mxu0 %v344
    %406 = vmatprep.subr.mxu0 0.0
    %407 = vmatpush1.msra.mxu0 %v345
    %408 = vmatprep.subr.mxu0 0.0
    %409 = vmatpush1.msra.mxu0 %v346
    %410 = vmatprep.subr.mxu0 0.0
    %411 = vmatpush1.msra.mxu0 %v347
    %412 = vmatprep.subr.mxu0 0.0
    %413 = vmatpush1.msra.mxu0 %v348
    %414 = vmatprep.subr.mxu0 0.0
    %415 = vmatpush1.msra.mxu0 %v349
    %416 = vmatprep.subr.mxu0 0.0
    %417 = vmatpush1.msra.mxu0 %v350
    %418 = vmatprep.subr.mxu0 0.0
    %419 = vmatpush1.msra.mxu0 %v351
    %420 = vmatprep.subr.mxu0 0.0
    %421 = vmatpush1.msra.mxu0 %v352
    %422 = vmatprep.subr.mxu0 0.0
    %423 = vmatpush1.msra.mxu0 %v353
    %424 = vmatprep.subr.mxu0 0.0
    %425 = vmatpush1.msra.mxu0 %v354
    %426 = vmatprep.subr.mxu0 0.0
    %427 = vmatpush1.msra.mxu0 %v355
    %428 = vmatprep.subr.mxu0 0.0
    %429 = vmatpush1.msra.mxu0 %v356
    %430 = vmatprep.subr.mxu0 0.0
    %431 = vmatpush1.msra.mxu0 %v357
    %432 = vmatprep.subr.mxu0 0.0
    %433 = vmatpush1.msra.mxu0 %v358
    %434 = vmatprep.subr.mxu0 0.0
    %435 = vmatpush1.msra.mxu0 %v359
    %436 = vmatprep.subr.mxu0 0.0
    %437 = vmatpush1.msra.mxu0 %v360
    %438 = vmatprep.subr.mxu0 0.0
    %439 = vmatpush1.msra.mxu0 %v361
    %440 = vmatprep.subr.mxu0 0.0
    %441 = vmatpush1.msra.mxu0 %v362
    %442 = vmatprep.subr.mxu0 0.0
    %443 = vmatpush1.msra.mxu0 %v363
    %444 = vmatprep.subr.mxu0 0.0
    %445 = vmatpush1.msra.mxu0 %v364
    %446 = vmatprep.subr.mxu0 0.0
    %447 = vmatpush1.msra.mxu0 %v365
    %448 = vmatprep.subr.mxu0 0.0
    %449 = vmatpush1.msra.mxu0 %v366
    %450 = vmatprep.subr.mxu0 0.0
    %451 = vmatpush1.msra.mxu0 %v367
    %452 = vmatprep.subr.mxu0 0.0
    %453 = vmatpush1.msra.mxu0 %v368
    %454 = vmatprep.subr.mxu0 0.0
    %455 = vmatpush1.msra.mxu0 %v369
    %456 = vmatprep.subr.mxu0 0.0
    %457 = vmatpush1.msra.mxu0 %v370
    %458 = vmatprep.mubr.f32.mxu0 %v337
    %459 = vmatmul.mubr.f32.gmra.mrb[0].mxu0 %v336
    %v460 = vpop.f32.mrb[0].mxu0
    %v461 = vadd.f32 %v392, %v460
    %v462 = vpop.f32.mrb[0].mxu0
    %463 = vdwg.mxu0
    %464 = vmatprep.subr.mxu0 0.0
    %465 = vmatpush1.msra.mxu0 %v371
    %466 = vmatprep.subr.mxu0 0.0
    %467 = vmatpush1.msra.mxu0 %v372
    %468 = vmatprep.subr.mxu0 0.0
    %469 = vmatpush1.msra.mxu0 %v373
    %470 = vmatprep.subr.mxu0 0.0
    %471 = vmatpush1.msra.mxu0 %v374
    %472 = vmatprep.subr.mxu0 0.0
    %473 = vmatpush1.msra.mxu0 %v375
    %474 = vmatprep.subr.mxu0 0.0
    %475 = vmatpush1.msra.mxu0 %v376
    %476 = vmatprep.subr.mxu0 0.0
    %477 = vmatpush1.msra.mxu0 %v377
    %478 = vmatprep.subr.mxu0 0.0
    %479 = vmatpush1.msra.mxu0 %v378
    %480 = vmatprep.subr.mxu0 0.0
    %481 = vmatpush1.msra.mxu0 %v379
    %482 = vmatprep.subr.mxu0 0.0
    %483 = vmatpush1.msra.mxu0 %v380
    %484 = vmatprep.subr.mxu0 0.0
    %485 = vmatpush1.msra.mxu0 %v381
    %486 = vmatprep.subr.mxu0 0.0
    %487 = vmatpush1.msra.mxu0 %v382
    %488 = vmatprep.subr.mxu0 0.0
    %489 = vmatpush1.msra.mxu0 %v383
    %490 = vmatprep.subr.mxu0 0.0
    %491 = vmatpush1.msra.mxu0 %v384
    %492 = vmatprep.subr.mxu0 0.0
    %493 = vmatpush1.msra.mxu0 %v385
    %494 = vmatprep.subr.mxu0 0.0
    %495 = vmatpush1.msra.mxu0 %v386
    %496 = vmatprep.subr.mxu0 0.0
    %497 = vmatpush1.msra.mxu0 0.0
    %498 = vmatprep.subr.mxu0 0.0
    %499 = vmatpush1.msra.mxu0 0.0
    %500 = vmatprep.subr.mxu0 0.0
    %501 = vmatpush1.msra.mxu0 0.0
    %502 = vmatprep.subr.mxu0 0.0
    %503 = vmatpush1.msra.mxu0 0.0
    %504 = vmatprep.subr.mxu0 0.0
    %505 = vmatpush1.msra.mxu0 0.0
    %506 = vmatprep.subr.mxu0 0.0
    %507 = vmatpush1.msra.mxu0 0.0
    %508 = vmatprep.subr.mxu0 0.0
    %509 = vmatpush1.msra.mxu0 0.0
    %510 = vmatprep.subr.mxu0 0.0
    %511 = vmatpush1.msra.mxu0 0.0
    %512 = vmatprep.subr.mxu0 0.0
    %513 = vmatpush1.msra.mxu0 0.0
    %514 = vmatprep.subr.mxu0 0.0
    %515 = vmatpush1.msra.mxu0 0.0
    %516 = vmatprep.subr.mxu0 0.0
    %517 = vmatpush1.msra.mxu0 0.0
    %518 = vmatprep.subr.mxu0 0.0
    %519 = vmatpush1.msra.mxu0 0.0
    %520 = vmatprep.subr.mxu0 0.0
    %521 = vmatpush1.msra.mxu0 0.0
    %522 = vmatprep.subr.mxu0 0.0
    %523 = vmatpush1.msra.mxu0 0.0
    %524 = vmatprep.subr.mxu0 0.0
    %525 = vmatpush1.msra.mxu0 0.0
    %526 = vmatprep.subr.mxu0 0.0
    %527 = vmatpush1.msra.mxu0 0.0
    %528 = vmatprep.mubr.f32.mxu0 0.0
    %529 = vmatmul.mubr.f32.gmra.mrb[0].mxu0 %v338
    %v530 = vpop.f32.mrb[0].mxu0
    %v531 = vadd.f32 %v461, %v530
    %v532 = vpop.f32.mrb[0].mxu0
    %533 = vdwg.mxu0
    %v534 = vmax.f32 %v531, 0.0
    %v535 = vld [vmem:[#allocation8] sm:$0xff]
    %v536 = vld [vmem:[#allocation8 + $0x8] sm:$0xff]
    %v537 = vld [vmem:[#allocation8 + $0x10] sm:$0xff]
    %v538 = vld [vmem:[#allocation8 + $0x18] sm:$0xff]
    %v539 = vld [vmem:[#allocation8 + $0x20] sm:$0xff]
    %v540 = vld [vmem:[#allocation8 + $0x28] sm:$0xff]
    %v541 = vld [vmem:[#allocation8 + $0x30] sm:$0xff]
    %v542 = vld [vmem:[#allocation8 + $0x38] sm:$0xff]
    %v543 = vld [vmem:[#allocation8 + $0x40] sm:$0xff]
    %v544 = vld [vmem:[#allocation8 + $0x48] sm:$0xff]
    %v545 = vld [vmem:[#allocation8 + $0x50] sm:$0xff]
    %v546 = vld [vmem:[#allocation8 + $0x58] sm:$0xff]
    %v547 = vld [vmem:[#allocation8 + $0x60] sm:$0xff]
    %v548 = vld [vmem:[#allocation8 + $0x68] sm:$0xff]
    %v549 = vld [vmem:[#allocation8 + $0x70] sm:$0xff]
    %v550 = vld [vmem:[#allocation8 + $0x78] sm:$0xff]
    %v551 = vld [vmem:[%s6] sm:$0x1]
    %v553 = vlaneseq
    %v554 = vshrl.u32 %v553, 7
    %v555 = vsub.s32 0, %v554
    %v556 = vrot.slane %v551, %v555
    %558 = vmatprep.subr.mxu0 0.0
    %559 = vmatpush1.msra.mxu0 %v535
    %560 = vmatprep.subr.mxu0 0.0
    %561 = vmatpush1.msra.mxu0 %v536
    %562 = vmatprep.subr.mxu0 0.0
    %563 = vmatpush1.msra.mxu0 %v537
    %564 = vmatprep.subr.mxu0 0.0
    %565 = vmatpush1.msra.mxu0 %v538
    %566 = vmatprep.subr.mxu0 0.0
    %567 = vmatpush1.msra.mxu0 %v539
    %568 = vmatprep.subr.mxu0 0.0
    %569 = vmatpush1.msra.mxu0 %v540
    %570 = vmatprep.subr.mxu0 0.0
    %571 = vmatpush1.msra.mxu0 %v541
    %572 = vmatprep.subr.mxu0 0.0
    %573 = vmatpush1.msra.mxu0 %v542
    %574 = vmatprep.subr.mxu0 0.0
    %575 = vmatpush1.msra.mxu0 %v543
    %576 = vmatprep.subr.mxu0 0.0
    %577 = vmatpush1.msra.mxu0 %v544
    %578 = vmatprep.subr.mxu0 0.0
    %579 = vmatpush1.msra.mxu0 %v545
    %580 = vmatprep.subr.mxu0 0.0
    %581 = vmatpush1.msra.mxu0 %v546
    %582 = vmatprep.subr.mxu0 0.0
    %583 = vmatpush1.msra.mxu0 %v547
    %584 = vmatprep.subr.mxu0 0.0
    %585 = vmatpush1.msra.mxu0 %v548
    %586 = vmatprep.subr.mxu0 0.0
    %587 = vmatpush1.msra.mxu0 %v549
    %588 = vmatprep.subr.mxu0 0.0
    %589 = vmatpush1.msra.mxu0 %v550
    %590 = vmatprep.subr.mxu0 0.0
    %591 = vmatpush1.msra.mxu0 0.0
    %592 = vmatprep.subr.mxu0 0.0
    %593 = vmatpush1.msra.mxu0 0.0
    %594 = vmatprep.subr.mxu0 0.0
    %595 = vmatpush1.msra.mxu0 0.0
    %596 = vmatprep.subr.mxu0 0.0
    %597 = vmatpush1.msra.mxu0 0.0
    %598 = vmatprep.subr.mxu0 0.0
    %599 = vmatpush1.msra.mxu0 0.0
    %600 = vmatprep.subr.mxu0 0.0
    %601 = vmatpush1.msra.mxu0 0.0
    %602 = vmatprep.subr.mxu0 0.0
    %603 = vmatpush1.msra.mxu0 0.0
    %604 = vmatprep.subr.mxu0 0.0
    %605 = vmatpush1.msra.mxu0 0.0
    %606 = vmatprep.subr.mxu0 0.0
    %607 = vmatpush1.msra.mxu0 0.0
    %608 = vmatprep.subr.mxu0 0.0
    %609 = vmatpush1.msra.mxu0 0.0
    %610 = vmatprep.subr.mxu0 0.0
    %611 = vmatpush1.msra.mxu0 0.0
    %612 = vmatprep.subr.mxu0 0.0
    %613 = vmatpush1.msra.mxu0 0.0
    %614 = vmatprep.subr.mxu0 0.0
    %615 = vmatpush1.msra.mxu0 0.0
    %616 = vmatprep.subr.mxu0 0.0
    %617 = vmatpush1.msra.mxu0 0.0
    %618 = vmatprep.subr.mxu0 0.0
    %619 = vmatpush1.msra.mxu0 0.0
    %620 = vmatprep.subr.mxu0 0.0
    %621 = vmatpush1.msra.mxu0 0.0
    %622 = vmatprep.mubr.f32.mxu0 0.0
    %623 = vmatmul.mubr.f32.gmra.mrb[0].mxu0 %v534
    %v624 = vpop.f32.mrb[0].mxu0
    %v625 = vadd.f32 %v556, %v624
    %v626 = vpop.f32.mrb[0].mxu0
    %627 = vdwg.mxu0
    %628 = vst [vmem:[#allocation10] sm:$0xff] %v625
    // Predicated region
    $region46: #{tpu_custom_call.1} parent=1 // pred_check
      _
    $region47: #{tpu_custom_call.1} parent=1 // pred_check_branch
      %630 = sbr.rel (0) target = $region49
    $region48: #{tpu_custom_call.1} parent=1 // pred_region
      %s632 = ssub.s32 128, 128
      %633 = vsyncadd [#allocation4], %s632
      %s635 = sshll.u32 [#allocation10], 4
      %s636 = int_to_ptr.vmem [resolvable:$true] %s635
      %638 = dma.vmem_to_hbm [thread:$0]  %s636, 128, %s7, [#allocation4]
    $region49: #{tpu_custom_call.1} parent=1 // pred_fallthru
      _
    // Predicated region
    $region50: #{tpu_custom_call.1} parent=1 // pred_check
      _
    $region51: #{tpu_custom_call.1} parent=1 // pred_check_branch
      %640 = sbr.rel (0) target = $region53
    $region52: #{tpu_custom_call.1} parent=1 // pred_region
      %641 = dma.done [#allocation4], 128
    $region53: #{tpu_custom_call.1} parent=1 // pred_fallthru
      _
    %642 = vsyncpa [#allocation3], 1
    %643 = vsyncpa [#allocation6], 1
    %644 = vsyncpa [#allocation9], 1
    %645 = vsyncpa [#allocation4], 1

</llo_original>
